<compile_context>
chip_gen: v7x
topology: tpu7x:2x2x1
jax: 0.10.0
libtpu: 0.0.40
codegen_flags: <defaults>
</compile_context>

<pallas_src>
import jax
import jax.numpy as jnp
import numpy as np
from jax import lax
from jax.experimental import pallas as pl
from jax.experimental.pallas import tpu as pltpu


# ---------------------------------------------------------------------------
# Pallas kernel: one re-parameterized RepVGG block = matmul + bias + ReLU.
# ---------------------------------------------------------------------------
def repvgg_fused_kernel(patches_ref, w_ref, b_ref, out_ref):
    acc = jnp.dot(patches_ref[...], w_ref[...],
                  preferred_element_type=jnp.float32)
    out_ref[...] = jnp.maximum(acc + b_ref[...], 0.0).astype(out_ref.dtype)


def _round_up(x, mult):
    return ((x + mult - 1) // mult) * mult


def _choose_tm(m, k, n, *, vmem_budget_bytes=36 * 1024 * 1024, max_tm=2048):
    """Pick the M tile from a VMEM budget.

    Budget model: double-buffered bf16 patches tile + double-buffered f32
    output tile + (pipeline-buffered) bf16 weights + bias.  36 MiB budget
    leaves headroom under v7x's 64 MiB physical VMEM.
    """
    bytes_fixed = 2 * k * n * 2 + 2 * n * 4           # weights (x2 bufs) + bias
    bytes_per_row = 2 * k * 2 + 2 * n * 4             # patches + out, x2 bufs
    tm = (vmem_budget_bytes - bytes_fixed) // max(bytes_per_row, 1)
    tm = int(max(256, min(tm, max_tm)))
    tm = (tm // 256) * 256
    # Don't allocate a block much larger than the whole problem.
    tm = min(tm, _round_up(m, 16))
    # Keep several grid steps so the "parallel" axis has work to shard (v7x).
    while tm >= 512 and pl.cdiv(m, tm) < 8:
        tm //= 2
    return max(tm, 16)


def repvgg_block_pallas(patches2d, w_mat, bias_row):
    """patches2d: (M, 9*Cin) bf16, w_mat: (9*Cin, Npad) bf16, bias: (1, Npad) f32."""
    m, k = patches2d.shape
    n = w_mat.shape[1]
    tm = _choose_tm(m, k, n)
    grid = (pl.cdiv(m, tm),)

    return pl.pallas_call(
        repvgg_fused_kernel,
        out_shape=jax.ShapeDtypeStruct((m, n), jnp.float32),
        grid_spec=pltpu.PrefetchScalarGridSpec(
            num_scalar_prefetch=0,
            grid=grid,
            in_specs=[
                pl.BlockSpec((tm, k), lambda i: (i, 0)),   # im2col patches tile
                pl.BlockSpec((k, n), lambda i: (0, 0)),    # folded weights
                pl.BlockSpec((1, n), lambda i: (0, 0)),    # folded bias
            ],
            out_specs=pl.BlockSpec((tm, n), lambda i: (i, 0)),
        ),
        compiler_params=pltpu.CompilerParams(
            dimension_semantics=("parallel",),
            vmem_limit_bytes=48 * 1024 * 1024,
        ),
    )(patches2d, w_mat, bias_row)


# ---------------------------------------------------------------------------
# Host-side glue: BN folding / RepVGG re-parameterization, im2col, stage loop.
# ---------------------------------------------------------------------------
def fold_bn_scale_shift(gamma, beta, mean, var, eps):
    scale = gamma / jnp.sqrt(var + eps)
    shift = beta - mean * scale
    return scale, shift


def reparameterize_block(bp, compute_dtype):
    """Fold conv3x3+BN, conv1x1+BN and identity-BN into one weight + bias."""
    cin, cout = bp["in_channels"], bp["out_channels"]
    s1, t1 = fold_bn_scale_shift(*bp["bn1"], bp["eps"])
    s2, t2 = fold_bn_scale_shift(*bp["bn2"], bp["eps"])

    w_eq = bp["w1"] * s1[:, None, None, None]                      # 3x3 branch
    w_eq = w_eq + jnp.pad(bp["w2"] * s2[:, None, None, None],      # 1x1 branch
                          ((0, 0), (0, 0), (1, 1), (1, 1)))
    bias = t1 + t2
    if bp["has_identity"]:
        # identity BatchNorm branch (Cin == Cout, stride == 1); eps = 1e-5
        # (nn.BatchNorm2d default, unlike config.batch_norm_eps of the convs)
        sid, tid = fold_bn_scale_shift(*bp["bnid"], 1e-5)
        ident = (jnp.eye(cout, dtype=jnp.float32) * sid[None, :])[:, :, None, None]
        w_eq = w_eq + jnp.pad(ident, ((0, 0), (0, 0), (1, 1), (1, 1)))
        bias = bias + tid

    # conv weight -> matmul weight; (ky, kx, cin) row order matches the patches.
    w_mat = jnp.transpose(w_eq, (2, 3, 1, 0)).reshape(9 * cin, cout)

    # Lane-dense output: round Cout up to a multiple of 128.
    n_pad = _round_up(cout, 128)
    w_mat = jnp.pad(w_mat, ((0, 0), (0, n_pad - cout))).astype(compute_dtype)
    bias_row = jnp.pad(bias, (0, n_pad - cout)).reshape(1, n_pad)
    return w_mat, bias_row.astype(jnp.float32), n_pad


def extract_patches_3x3(x_nhwc, stride):
    """3x3, pad=1, stride-s patches ordered (ky, kx, c) along the last axis."""
    b, h, w, c = x_nhwc.shape
    xp = jnp.pad(x_nhwc, ((0, 0), (1, 1), (1, 1), (0, 0)))
    ho = (h + 2 - 3) // stride + 1
    wo = (w + 2 - 3) // stride + 1
    cols = []
    for ky in range(3):
        for kx in range(3):
            sl = xp[:, ky:ky + stride * (ho - 1) + 1:stride,
                    kx:kx + stride * (wo - 1) + 1:stride, :]
            cols.append(sl)
    patches = jnp.concatenate(cols, axis=-1)   # (B, Ho, Wo, 9*C)
    return patches, ho, wo


def repvgg_stage_forward(x_nchw, block_params, compute_dtype=jnp.bfloat16):
    """Pallas implementation of EfficientLoFTRRepVGGStage.forward (inference)."""
    h = jnp.transpose(x_nchw, (0, 2, 3, 1)).astype(jnp.float32)   # NCHW -> NHWC
    for bp in block_params:
        stride = bp["stride"]
        cin = bp["in_channels"]
        cout = bp["out_channels"]
        b = h.shape[0]

        w_mat, bias_row, _ = reparameterize_block(bp, compute_dtype)
        patches, ho, wo = extract_patches_3x3(h.astype(compute_dtype), stride)
        m = b * ho * wo
        patches2d = patches.reshape(m, 9 * cin)

        out2d = repvgg_block_pallas(patches2d, w_mat, bias_row)
        h = out2d[:, :cout].reshape(b, ho, wo, cout)
    return jnp.transpose(h, (0, 3, 1, 2))   # NHWC -> NCHW


# ---------------------------------------------------------------------------
# Pure-JAX f32 reference (lax.conv, no re-parameterization) for verification.
# ---------------------------------------------------------------------------
def bn_apply_nchw(x, gamma, beta, mean, var, eps):
    scale = (gamma / jnp.sqrt(var + eps))[None, :, None, None]
    shift = (beta - mean * gamma / jnp.sqrt(var + eps))[None, :, None, None]
    return x * scale + shift


def repvgg_stage_reference(x_nchw, block_params):
    h = x_nchw
    dn = ("NCHW", "OIHW", "NCHW")
    for bp in block_params:
        s = bp["stride"]
        y1 = lax.conv_general_dilated(h, bp["w1"], (s, s), ((1, 1), (1, 1)),
                                      dimension_numbers=dn,
                                      precision=lax.Precision.HIGHEST)
        y1 = bn_apply_nchw(y1, *bp["bn1"], bp["eps"])
        y2 = lax.conv_general_dilated(h, bp["w2"], (s, s), ((0, 0), (0, 0)),
                                      dimension_numbers=dn,
                                      precision=lax.Precision.HIGHEST)
        y2 = bn_apply_nchw(y2, *bp["bn2"], bp["eps"])
        out = y1 + y2
        if bp["has_identity"]:
            out = out + bn_apply_nchw(h, *bp["bnid"], 1e-5)
        h = jnp.maximum(out, 0.0)
    return h


# ---------------------------------------------------------------------------
# Deterministic parameter construction (synthetic "config").
# ---------------------------------------------------------------------------
def make_bn_params(key, c):
    k1, k2, k3, k4 = jax.random.split(key, 4)
    gamma = 1.0 + 0.1 * jax.random.normal(k1, (c,), jnp.float32)
    beta = 0.1 * jax.random.normal(k2, (c,), jnp.float32)
    mean = 0.1 * jax.random.normal(k3, (c,), jnp.float32)
    var = 0.5 + jnp.abs(jax.random.normal(k4, (c,), jnp.float32))
    return (gamma, beta, mean, var)


def make_stage_params(key, stage_in, stage_out, stage_stride, eps=1e-5):
    params = []
    for cin, cout, stride in zip(stage_in, stage_out, stage_stride):
        key, k1, k2, k3, k4, k5 = jax.random.split(key, 6)
        has_identity = (cin == cout) and (stride == 1)
        bp = {
            "in_channels": cin,
            "out_channels": cout,
            "stride": stride,
            "eps": eps,
            "has_identity": has_identity,
            "w1": 0.1 * jax.random.normal(k1, (cout, cin, 3, 3), jnp.float32),
            "w2": 0.1 * jax.random.normal(k2, (cout, cin, 1, 1), jnp.float32),
            "bn1": make_bn_params(k3, cout),
            "bn2": make_bn_params(k4, cout),
        }
        if has_identity:
            bp["bnid"] = make_bn_params(k5, cin)
        params.append(bp)
    return params


if __name__ == "__main__":
    key = jax.random.PRNGKey(0)
    kx, kp = jax.random.split(key)

    # Small synthetic config for one stage:
    #   block 0: in=4 -> out=8, stride=2 (no identity branch)
    #   block 1: in=8 -> out=8, stride=1 (identity BatchNorm branch)
    stage_in = (4, 8)
    stage_out = (8, 8)
    stage_stride = (2, 1)

    x = jax.random.normal(kx, (2, 4, 16, 16), jnp.float32)   # NCHW input
    block_params = make_stage_params(kp, stage_in, stage_out, stage_stride)

    fwd = jax.jit(lambda inp: repvgg_stage_forward(inp, block_params,
                                                   compute_dtype=jnp.bfloat16))
    out = jax.block_until_ready(fwd(x))
    ref = jax.block_until_ready(repvgg_stage_reference(x, block_params))

    assert out.shape == ref.shape, (out.shape, ref.shape)
    # bf16 matmul operands (f32 accumulation) give ~1% numerical noise vs the
    # pure-f32 reference; structural/semantic bugs would be O(1) off.
    np.testing.assert_allclose(np.asarray(out), np.asarray(ref),
                               rtol=8e-2, atol=8e-2)
    print("KERNEL_OK")
</pallas_src>

<mosaic_0001>
module attributes {stable_mosaic.version = 11 : i64} {
  func.func @repvgg_fused_kernel(%arg0: i32, %arg1: memref<128x36xbf16, #tpu.memory_space<vmem>>, %arg2: memref<36x128xbf16, #tpu.memory_space<vmem>>, %arg3: memref<1x128xf32, #tpu.memory_space<vmem>>, %arg4: memref<128x128xf32, #tpu.memory_space<vmem>>) attributes {dimension_semantics = [#tpu.dimension_semantics<parallel>], iteration_bounds = array<i64: 1>, scalar_prefetch = 0 : i64, scratch_operands = 0 : i64, tpu.core_type = #tpu.core_type<tc>, window_params = [{transform_indices = @transform_0, window_bounds = array<i64: 128, 36>}, {pipeline_mode = #tpu.pipeline_mode<synchronous>, transform_indices = @transform_1, window_bounds = array<i64: 36, 128>}, {pipeline_mode = #tpu.pipeline_mode<synchronous>, transform_indices = @transform_2, window_bounds = array<i64: 1, 128>}, {transform_indices = @transform_3, window_bounds = array<i64: 128, 128>}]} {
    %c0 = arith.constant 0 : index
    %c0_0 = arith.constant 0 : index
    %0 = vector.load %arg1[%c0, %c0_0] : memref<128x36xbf16, #tpu.memory_space<vmem>>, vector<128x36xbf16>
    %c0_1 = arith.constant 0 : index
    %c0_2 = arith.constant 0 : index
    %1 = vector.load %arg2[%c0_1, %c0_2] : memref<36x128xbf16, #tpu.memory_space<vmem>>, vector<36x128xbf16>
    %cst = arith.constant dense<0.000000e+00> : vector<128x128xf32>
    %2 = tpu.matmul %0, %1, %cst {dimension_numbers = #tpu.dot_dimension_numbers<[1], [0], [0], [1], [0, 0, 1, 1], [], []>} : vector<128x36xbf16>, vector<36x128xbf16>, vector<128x128xf32> -> vector<128x128xf32>
    %c0_3 = arith.constant 0 : index
    %c0_4 = arith.constant 0 : index
    %3 = vector.load %arg3[%c0_3, %c0_4] : memref<1x128xf32, #tpu.memory_space<vmem>>, vector<1x128xf32>
    %4 = vector.broadcast %3 : vector<1x128xf32> to vector<128x128xf32>
    %5 = arith.addf %2, %4 : vector<128x128xf32>
    %cst_5 = arith.constant 0.000000e+00 : f32
    %6 = vector.broadcast %cst_5 : f32 to vector<128x128xf32>
    %7 = arith.maximumf %5, %6 : vector<128x128xf32>
    %c0_6 = arith.constant 0 : index
    %c0_7 = arith.constant 0 : index
    %8 = vector.load %arg4[%c0_6, %c0_7] : memref<128x128xf32, #tpu.memory_space<vmem>>, vector<128x128xf32>
    tpu.vector_store %arg4[%c0_6, %c0_7], %7 {strides = array<i32>} : memref<128x128xf32, #tpu.memory_space<vmem>>, vector<128x128xf32>,
    return
  }
  func.func @transform_0(%arg0: i32) -> (i32, i32) {
    %c0_i32 = arith.constant 0 : i32
    %c0_i32_0 = arith.constant 0 : i32
    return %arg0, %c0_i32 : i32, i32
  }
  func.func @transform_1(%arg0: i32) -> (i32, i32) {
    %c0_i32 = arith.constant 0 : i32
    %c0_i32_0 = arith.constant 0 : i32
    %c0_i32_1 = arith.constant 0 : i32
    return %c0_i32, %c0_i32_0 : i32, i32
  }
  func.func @transform_2(%arg0: i32) -> (i32, i32) {
    %c0_i32 = arith.constant 0 : i32
    %c0_i32_0 = arith.constant 0 : i32
    %c0_i32_1 = arith.constant 0 : i32
    return %c0_i32, %c0_i32_0 : i32, i32
  }
  func.func @transform_3(%arg0: i32) -> (i32, i32) {
    %c0_i32 = arith.constant 0 : i32
    %c0_i32_0 = arith.constant 0 : i32
    return %arg0, %c0_i32 : i32, i32
  }
}

module attributes {stable_mosaic.version = 11 : i64} {
  func.func @repvgg_fused_kernel(%arg0: i32, %arg1: memref<128x72xbf16, #tpu.memory_space<vmem>>, %arg2: memref<72x128xbf16, #tpu.memory_space<vmem>>, %arg3: memref<1x128xf32, #tpu.memory_space<vmem>>, %arg4: memref<128x128xf32, #tpu.memory_space<vmem>>) attributes {dimension_semantics = [#tpu.dimension_semantics<parallel>], iteration_bounds = array<i64: 1>, scalar_prefetch = 0 : i64, scratch_operands = 0 : i64, tpu.core_type = #tpu.core_type<tc>, window_params = [{transform_indices = @transform_0, window_bounds = array<i64: 128, 72>}, {pipeline_mode = #tpu.pipeline_mode<synchronous>, transform_indices = @transform_1, window_bounds = array<i64: 72, 128>}, {pipeline_mode = #tpu.pipeline_mode<synchronous>, transform_indices = @transform_2, window_bounds = array<i64: 1, 128>}, {transform_indices = @transform_3, window_bounds = array<i64: 128, 128>}]} {
    %c0 = arith.constant 0 : index
    %c0_0 = arith.constant 0 : index
    %0 = vector.load %arg1[%c0, %c0_0] : memref<128x72xbf16, #tpu.memory_space<vmem>>, vector<128x72xbf16>
    %c0_1 = arith.constant 0 : index
    %c0_2 = arith.constant 0 : index
    %1 = vector.load %arg2[%c0_1, %c0_2] : memref<72x128xbf16, #tpu.memory_space<vmem>>, vector<72x128xbf16>
    %cst = arith.constant dense<0.000000e+00> : vector<128x128xf32>
    %2 = tpu.matmul %0, %1, %cst {dimension_numbers = #tpu.dot_dimension_numbers<[1], [0], [0], [1], [0, 0, 1, 1], [], []>} : vector<128x72xbf16>, vector<72x128xbf16>, vector<128x128xf32> -> vector<128x128xf32>
    %c0_3 = arith.constant 0 : index
    %c0_4 = arith.constant 0 : index
    %3 = vector.load %arg3[%c0_3, %c0_4] : memref<1x128xf32, #tpu.memory_space<vmem>>, vector<1x128xf32>
    %4 = vector.broadcast %3 : vector<1x128xf32> to vector<128x128xf32>
    %5 = arith.addf %2, %4 : vector<128x128xf32>
    %cst_5 = arith.constant 0.000000e+00 : f32
    %6 = vector.broadcast %cst_5 : f32 to vector<128x128xf32>
    %7 = arith.maximumf %5, %6 : vector<128x128xf32>
    %c0_6 = arith.constant 0 : index
    %c0_7 = arith.constant 0 : index
    %8 = vector.load %arg4[%c0_6, %c0_7] : memref<128x128xf32, #tpu.memory_space<vmem>>, vector<128x128xf32>
    tpu.vector_store %arg4[%c0_6, %c0_7], %7 {strides = array<i32>} : memref<128x128xf32, #tpu.memory_space<vmem>>, vector<128x128xf32>,
    return
  }
  func.func @transform_0(%arg0: i32) -> (i32, i32) {
    %c0_i32 = arith.constant 0 : i32
    %c0_i32_0 = arith.constant 0 : i32
    return %arg0, %c0_i32 : i32, i32
  }
  func.func @transform_1(%arg0: i32) -> (i32, i32) {
    %c0_i32 = arith.constant 0 : i32
    %c0_i32_0 = arith.constant 0 : i32
    %c0_i32_1 = arith.constant 0 : i32
    return %c0_i32, %c0_i32_0 : i32, i32
  }
  func.func @transform_2(%arg0: i32) -> (i32, i32) {
    %c0_i32 = arith.constant 0 : i32
    %c0_i32_0 = arith.constant 0 : i32
    %c0_i32_1 = arith.constant 0 : i32
    return %c0_i32, %c0_i32_0 : i32, i32
  }
  func.func @transform_3(%arg0: i32) -> (i32, i32) {
    %c0_i32 = arith.constant 0 : i32
    %c0_i32_0 = arith.constant 0 : i32
    return %arg0, %c0_i32 : i32, i32
  }
}

</mosaic_0001>

<llo_original>
// kernel: _lambda_.2
$region0: #{_lambda_.2}
  #allocation0 [shape = 'u32[]', space=smem, size = 0x4, offset = 0x4, fixed_abs, tag = 'smem constant byte address 0x4 - core index']
  #allocation1 [shape = 'u32[144,128]{1,0:T(1,128)}', space=vmem, size = 0x12000, scoped, tag = 'internal scratch']
  %s0 = inlined_call_operand.vmem [shape: bf16[128,36], index: 0, kind: input, shape index: {}]
  %s1 = inlined_call_operand.vmem [shape: bf16[36,128], index: 1, kind: input, shape index: {}]
  %s2 = inlined_call_operand.vmem [shape: f32[1,128], index: 2, kind: input, shape index: {}]
  %s3 = inlined_call_operand.vmem [shape: f32[128,128], index: 3, kind: output, shape index: {}]
  %s4 = sld [smem:[#allocation0]]
  $region22: #{_lambda_.2} parent=0
    _
  %s6 = ssub.s32 1, %s4
  %s7 = scalar_select 0, %s6, %s4
  // Predicated region
  $region2: #{_lambda_.2} parent=0 // pred_check
    _
  $region3: #{_lambda_.2} parent=0 // pred_check_branch
    %9 = sbr.rel (0) target = $region5
  $region4: #{_lambda_.2} parent=0 // pred_region
    _
  $region5: #{_lambda_.2} parent=0 // pred_fallthru
    _
  // Predicated region
  $region6: #{_lambda_.2} parent=0 // pred_check
    _
  $region7: #{_lambda_.2} parent=0 // pred_check_branch
    %11 = sbr.rel (0) target = $region9
  $region8: #{_lambda_.2} parent=0 // pred_region
    _
  $region9: #{_lambda_.2} parent=0 // pred_fallthru
    _
  // Predicated region
  $region10: #{_lambda_.2} parent=0 // pred_check
    _
  $region11: #{_lambda_.2} parent=0 // pred_check_branch
    %13 = sbr.rel (0) target = $region13
  $region12: #{_lambda_.2} parent=0 // pred_region
    _
  $region13: #{_lambda_.2} parent=0 // pred_fallthru
    _
  %v15 = vld [vmem:[%s0] sm:$0xf]
  %v16 = vld [vmem:[%s0 + $0x4] sm:$0xf]
  %v17 = vld [vmem:[%s0 + $0x8] sm:$0xf]
  %v18 = vld [vmem:[%s0 + $0xc] sm:$0xf]
  %v19 = vld [vmem:[%s0 + $0x10] sm:$0xf]
  %v20 = vld [vmem:[%s0 + $0x14] sm:$0xf]
  %v21 = vld [vmem:[%s0 + $0x18] sm:$0xf]
  %v22 = vld [vmem:[%s0 + $0x1c] sm:$0xf]
  %v23 = vld [vmem:[%s0 + $0x20] sm:$0xf]
  %v24 = vld [vmem:[%s0 + $0x24] sm:$0xf]
  %v25 = vld [vmem:[%s0 + $0x28] sm:$0xf]
  %v26 = vld [vmem:[%s0 + $0x2c] sm:$0xf]
  %v27 = vld [vmem:[%s0 + $0x30] sm:$0xf]
  %v28 = vld [vmem:[%s0 + $0x34] sm:$0xf]
  %v29 = vld [vmem:[%s0 + $0x38] sm:$0xf]
  %v30 = vld [vmem:[%s0 + $0x3c] sm:$0xf]
  %v31 = vld [vmem:[%s1] sm:$0xf]
  %v32 = vld [vmem:[%s1 + $0x4] sm:$0xf]
  %v33 = vld [vmem:[%s1 + $0x8] sm:$0xf]
  %v34 = vld [vmem:[%s1 + $0xc] sm:$0xf]
  %v35 = vld [vmem:[%s1 + $0x10] sm:$0x3]
  %v36 = vld [vmem:[%s2] sm:$0x1]
  %v38 = vlaneseq
  %v39 = vshrl.u32 %v38, 7
  %v40 = vsub.s32 0, %v39
  %v41 = vrot.slane %v36, %v40
  %v59 = vunpack.c.l.b16 %v15
  %v60 = vunpack.c.l.b16 %v16
  %v61 = vunpack.c.l.b16 %v17
  %v62 = vunpack.c.l.b16 %v18
  %v63 = vunpack.c.l.b16 %v19
  %v64 = vunpack.c.l.b16 %v20
  %v65 = vunpack.c.l.b16 %v21
  %v66 = vunpack.c.l.b16 %v22
  %v67 = vunpack.c.l.b16 %v23
  %v68 = vunpack.c.l.b16 %v24
  %v69 = vunpack.c.l.b16 %v25
  %v70 = vunpack.c.l.b16 %v26
  %v71 = vunpack.c.l.b16 %v27
  %v72 = vunpack.c.l.b16 %v28
  %v73 = vunpack.c.l.b16 %v29
  %v74 = vunpack.c.l.b16 %v30
  %v75 = vpack.c.b16 %v60, %v59
  %v76 = vpack.c.b16 %v62, %v61
  %v77 = vpack.c.b16 %v64, %v63
  %v78 = vpack.c.b16 %v66, %v65
  %v79 = vpack.c.b16 %v68, %v67
  %v80 = vpack.c.b16 %v70, %v69
  %v81 = vpack.c.b16 %v72, %v71
  %v82 = vpack.c.b16 %v74, %v73
  %v88 = vunpack.c.l.b16 %v31
  %v89 = vunpack.c.l.b16 %v32
  %v90 = vunpack.c.l.b16 %v33
  %v91 = vunpack.c.l.b16 %v34
  %v92 = vunpack.c.l.b16 %v35
  %v93 = vpack.c.b16 %v89, %v88
  %v94 = vpack.c.b16 %v91, %v90
  %v95 = vpack.c.b16 %v92, %v92
  %vm98 = vcmask 293888
  %v100 = vsel %vm98, %v75, 0
  %v103 = vsel %vm98, %v76, 0
  %v106 = vsel %vm98, %v77, 0
  %v109 = vsel %vm98, %v78, 0
  %v112 = vsel %vm98, %v79, 0
  %v115 = vsel %vm98, %v80, 0
  %v118 = vsel %vm98, %v81, 0
  %v121 = vsel %vm98, %v82, 0
  %vm123 = vcmask 1041408
  %v125 = vsel %vm123, %v95, 0
  %127 = vmatprep.subr.bf16.mxu0 0
  %128 = vmatpush1.bf16.msra.mxu0 %v93
  %129 = vmatprep.subr.bf16.mxu0 0
  %130 = vmatpush1.bf16.msra.mxu0 %v94
  %131 = vmatprep.subr.bf16.mxu0 0
  %132 = vmatpush1.bf16.msra.mxu0 %v125
  %133 = vmatprep.subr.bf16.mxu0 0
  %134 = vmatpush1.bf16.msra.mxu0 0
  %135 = vmatprep.subr.bf16.mxu0 0
  %136 = vmatpush1.bf16.msra.mxu0 0
  %137 = vmatprep.subr.bf16.mxu0 0
  %138 = vmatpush1.bf16.msra.mxu0 0
  %139 = vmatprep.subr.bf16.mxu0 0
  %140 = vmatpush1.bf16.msra.mxu0 0
  %141 = vmatprep.subr.bf16.mxu0 0
  %142 = vmatpush1.bf16.msra.mxu0 0
  %143 = vmatprep.subr.bf16.mxu0 0
  %144 = vmatpush1.bf16.msra.mxu0 0
  %145 = vmatprep.subr.bf16.mxu0 0
  %146 = vmatpush1.bf16.msra.mxu0 0
  %147 = vmatprep.subr.bf16.mxu0 0
  %148 = vmatpush1.bf16.msra.mxu0 0
  %149 = vmatprep.subr.bf16.mxu0 0
  %150 = vmatpush1.bf16.msra.mxu0 0
  %151 = vmatprep.subr.bf16.mxu0 0
  %152 = vmatpush1.bf16.msra.mxu0 0
  %153 = vmatprep.subr.bf16.mxu0 0
  %154 = vmatpush1.bf16.msra.mxu0 0
  %155 = vmatprep.subr.bf16.mxu0 0
  %156 = vmatpush1.bf16.msra.mxu0 0
  %157 = vmatprep.subr.bf16.mxu0 0
  %158 = vmatpush1.bf16.msra.mxu0 0
  %159 = vmatprep.mubr.bf16.mxu0 0
  %160 = vmatmul.mubr.bf16.gmra.mrb[0].mxu0 %v100
  %v161 = vpop.f32.mrb[0].mxu0
  %v162 = vadd.f32 %v41, %v161
  %v163 = vpop.f32.mrb[0].mxu0
  %v164 = vpop.f32.mrb[0].mxu0
  %v165 = vadd.f32 %v41, %v164
  %v166 = vpop.f32.mrb[0].mxu0
  %167 = vmatprep.mubr.bf16.mxu0 0
  %168 = vmatmul.mubr.bf16.gmra.mrb[0].mxu0 %v103
  %v169 = vpop.f32.mrb[0].mxu0
  %v170 = vadd.f32 %v41, %v169
  %v171 = vpop.f32.mrb[0].mxu0
  %v172 = vpop.f32.mrb[0].mxu0
  %v173 = vadd.f32 %v41, %v172
  %v174 = vpop.f32.mrb[0].mxu0
  %175 = vmatprep.mubr.bf16.mxu0 0
  %176 = vmatmul.mubr.bf16.gmra.mrb[0].mxu0 %v106
  %v177 = vpop.f32.mrb[0].mxu0
  %v178 = vadd.f32 %v41, %v177
  %v179 = vpop.f32.mrb[0].mxu0
  %v180 = vpop.f32.mrb[0].mxu0
  %v181 = vadd.f32 %v41, %v180
  %v182 = vpop.f32.mrb[0].mxu0
  %183 = vmatprep.mubr.bf16.mxu0 0
  %184 = vmatmul.mubr.bf16.gmra.mrb[0].mxu0 %v109
  %v185 = vpop.f32.mrb[0].mxu0
  %v186 = vadd.f32 %v41, %v185
  %v187 = vpop.f32.mrb[0].mxu0
  %v188 = vpop.f32.mrb[0].mxu0
  %v189 = vadd.f32 %v41, %v188
  %v190 = vpop.f32.mrb[0].mxu0
  %191 = vmatprep.mubr.bf16.mxu0 0
  %192 = vmatmul.mubr.bf16.gmra.mrb[0].mxu0 %v112
  %v193 = vpop.f32.mrb[0].mxu0
  %v194 = vadd.f32 %v41, %v193
  %v195 = vpop.f32.mrb[0].mxu0
  %v196 = vpop.f32.mrb[0].mxu0
  %v197 = vadd.f32 %v41, %v196
  %v198 = vpop.f32.mrb[0].mxu0
  %199 = vmatprep.mubr.bf16.mxu0 0
  %200 = vmatmul.mubr.bf16.gmra.mrb[0].mxu0 %v115
  %v201 = vpop.f32.mrb[0].mxu0
  %v202 = vadd.f32 %v41, %v201
  %v203 = vpop.f32.mrb[0].mxu0
  %v204 = vpop.f32.mrb[0].mxu0
  %v205 = vadd.f32 %v41, %v204
  %v206 = vpop.f32.mrb[0].mxu0
  %207 = vmatprep.mubr.bf16.mxu0 0
  %208 = vmatmul.mubr.bf16.gmra.mrb[0].mxu0 %v118
  %v209 = vpop.f32.mrb[0].mxu0
  %v210 = vadd.f32 %v41, %v209
  %v211 = vpop.f32.mrb[0].mxu0
  %v212 = vpop.f32.mrb[0].mxu0
  %v213 = vadd.f32 %v41, %v212
  %v214 = vpop.f32.mrb[0].mxu0
  %215 = vmatprep.mubr.bf16.mxu0 0
  %216 = vmatmul.mubr.bf16.gmra.mrb[0].mxu0 %v121
  %v217 = vpop.f32.mrb[0].mxu0
  %v218 = vadd.f32 %v41, %v217
  %v219 = vpop.f32.mrb[0].mxu0
  %v220 = vpop.f32.mrb[0].mxu0
  %v221 = vadd.f32 %v41, %v220
  %v222 = vpop.f32.mrb[0].mxu0
  %223 = vdwg.mxu0
  %v224 = vmax.f32 %v162, 0.0
  %v225 = vmax.f32 %v165, 0.0
  %v226 = vmax.f32 %v170, 0.0
  %v227 = vmax.f32 %v173, 0.0
  %v228 = vmax.f32 %v178, 0.0
  %v229 = vmax.f32 %v181, 0.0
  %v230 = vmax.f32 %v186, 0.0
  %v231 = vmax.f32 %v189, 0.0
  %v232 = vmax.f32 %v194, 0.0
  %v233 = vmax.f32 %v197, 0.0
  %v234 = vmax.f32 %v202, 0.0
  %v235 = vmax.f32 %v205, 0.0
  %v236 = vmax.f32 %v210, 0.0
  %v237 = vmax.f32 %v213, 0.0
  %v238 = vmax.f32 %v218, 0.0
  %v239 = vmax.f32 %v221, 0.0
  %240 = vst [vmem:[%s3] sm:$0xff] %v224
  %241 = vst [vmem:[%s3 + $0x8] sm:$0xff] %v225
  %242 = vst [vmem:[%s3 + $0x10] sm:$0xff] %v226
  %243 = vst [vmem:[%s3 + $0x18] sm:$0xff] %v227
  %244 = vst [vmem:[%s3 + $0x20] sm:$0xff] %v228
  %245 = vst [vmem:[%s3 + $0x28] sm:$0xff] %v229
  %246 = vst [vmem:[%s3 + $0x30] sm:$0xff] %v230
  %247 = vst [vmem:[%s3 + $0x38] sm:$0xff] %v231
  %248 = vst [vmem:[%s3 + $0x40] sm:$0xff] %v232
  %249 = vst [vmem:[%s3 + $0x48] sm:$0xff] %v233
  %250 = vst [vmem:[%s3 + $0x50] sm:$0xff] %v234
  %251 = vst [vmem:[%s3 + $0x58] sm:$0xff] %v235
  %252 = vst [vmem:[%s3 + $0x60] sm:$0xff] %v236
  %253 = vst [vmem:[%s3 + $0x68] sm:$0xff] %v237
  %254 = vst [vmem:[%s3 + $0x70] sm:$0xff] %v238
  %255 = vst [vmem:[%s3 + $0x78] sm:$0xff] %v239
  // Predicated region
  $region14: #{_lambda_.2} parent=0 // pred_check
    _
  $region15: #{_lambda_.2} parent=0 // pred_check_branch
    %257 = sbr.rel (0) target = $region17
  $region16: #{_lambda_.2} parent=0 // pred_region
    _
  $region17: #{_lambda_.2} parent=0 // pred_fallthru
    _
  // Predicated region
  $region18: #{_lambda_.2} parent=0 // pred_check
    _
  $region19: #{_lambda_.2} parent=0 // pred_check_branch
    %259 = sbr.rel (0) target = $region21
  $region20: #{_lambda_.2} parent=0 // pred_region
    _
  $region21: #{_lambda_.2} parent=0 // pred_fallthru
    _

// kernel: _lambda_.3
$region0: #{_lambda_.3}
  #allocation0 [shape = 'u32[]', space=smem, size = 0x4, offset = 0x4, fixed_abs, tag = 'smem constant byte address 0x4 - core index']
  #allocation1 [shape = 'u32[144,128]{1,0:T(1,128)}', space=vmem, size = 0x12000, scoped, tag = 'internal scratch']
  %s0 = inlined_call_operand.vmem [shape: bf16[128,72], index: 0, kind: input, shape index: {}]
  %s1 = inlined_call_operand.vmem [shape: bf16[72,128], index: 1, kind: input, shape index: {}]
  %s2 = inlined_call_operand.vmem [shape: f32[1,128], index: 2, kind: input, shape index: {}]
  %s3 = inlined_call_operand.vmem [shape: f32[128,128], index: 3, kind: output, shape index: {}]
  %s4 = sld [smem:[#allocation0]]
  $region22: #{_lambda_.3} parent=0
    _
  %s6 = ssub.s32 1, %s4
  %s7 = scalar_select 0, %s6, %s4
  // Predicated region
  $region2: #{_lambda_.3} parent=0 // pred_check
    _
  $region3: #{_lambda_.3} parent=0 // pred_check_branch
    %9 = sbr.rel (0) target = $region5
  $region4: #{_lambda_.3} parent=0 // pred_region
    _
  $region5: #{_lambda_.3} parent=0 // pred_fallthru
    _
  // Predicated region
  $region6: #{_lambda_.3} parent=0 // pred_check
    _
  $region7: #{_lambda_.3} parent=0 // pred_check_branch
    %11 = sbr.rel (0) target = $region9
  $region8: #{_lambda_.3} parent=0 // pred_region
    _
  $region9: #{_lambda_.3} parent=0 // pred_fallthru
    _
  // Predicated region
  $region10: #{_lambda_.3} parent=0 // pred_check
    _
  $region11: #{_lambda_.3} parent=0 // pred_check_branch
    %13 = sbr.rel (0) target = $region13
  $region12: #{_lambda_.3} parent=0 // pred_region
    _
  $region13: #{_lambda_.3} parent=0 // pred_fallthru
    _
  %v15 = vld [vmem:[%s0] sm:$0xf]
  %v16 = vld [vmem:[%s0 + $0x4] sm:$0xf]
  %v17 = vld [vmem:[%s0 + $0x8] sm:$0xf]
  %v18 = vld [vmem:[%s0 + $0xc] sm:$0xf]
  %v19 = vld [vmem:[%s0 + $0x10] sm:$0xf]
  %v20 = vld [vmem:[%s0 + $0x14] sm:$0xf]
  %v21 = vld [vmem:[%s0 + $0x18] sm:$0xf]
  %v22 = vld [vmem:[%s0 + $0x1c] sm:$0xf]
  %v23 = vld [vmem:[%s0 + $0x20] sm:$0xf]
  %v24 = vld [vmem:[%s0 + $0x24] sm:$0xf]
  %v25 = vld [vmem:[%s0 + $0x28] sm:$0xf]
  %v26 = vld [vmem:[%s0 + $0x2c] sm:$0xf]
  %v27 = vld [vmem:[%s0 + $0x30] sm:$0xf]
  %v28 = vld [vmem:[%s0 + $0x34] sm:$0xf]
  %v29 = vld [vmem:[%s0 + $0x38] sm:$0xf]
  %v30 = vld [vmem:[%s0 + $0x3c] sm:$0xf]
  %v31 = vld [vmem:[%s1] sm:$0xf]
  %v32 = vld [vmem:[%s1 + $0x4] sm:$0xf]
  %v33 = vld [vmem:[%s1 + $0x8] sm:$0xf]
  %v34 = vld [vmem:[%s1 + $0xc] sm:$0xf]
  %v35 = vld [vmem:[%s1 + $0x10] sm:$0xf]
  %v36 = vld [vmem:[%s1 + $0x14] sm:$0xf]
  %v37 = vld [vmem:[%s1 + $0x18] sm:$0xf]
  %v38 = vld [vmem:[%s1 + $0x1c] sm:$0xf]
  %v39 = vld [vmem:[%s1 + $0x20] sm:$0xf]
  %v40 = vld [vmem:[%s2] sm:$0x1]
  %v42 = vlaneseq
  %v43 = vshrl.u32 %v42, 7
  %v44 = vsub.s32 0, %v43
  %v45 = vrot.slane %v40, %v44
  %v63 = vunpack.c.l.b16 %v15
  %v64 = vunpack.c.l.b16 %v16
  %v65 = vunpack.c.l.b16 %v17
  %v66 = vunpack.c.l.b16 %v18
  %v67 = vunpack.c.l.b16 %v19
  %v68 = vunpack.c.l.b16 %v20
  %v69 = vunpack.c.l.b16 %v21
  %v70 = vunpack.c.l.b16 %v22
  %v71 = vunpack.c.l.b16 %v23
  %v72 = vunpack.c.l.b16 %v24
  %v73 = vunpack.c.l.b16 %v25
  %v74 = vunpack.c.l.b16 %v26
  %v75 = vunpack.c.l.b16 %v27
  %v76 = vunpack.c.l.b16 %v28
  %v77 = vunpack.c.l.b16 %v29
  %v78 = vunpack.c.l.b16 %v30
  %v79 = vpack.c.b16 %v64, %v63
  %v80 = vpack.c.b16 %v66, %v65
  %v81 = vpack.c.b16 %v68, %v67
  %v82 = vpack.c.b16 %v70, %v69
  %v83 = vpack.c.b16 %v72, %v71
  %v84 = vpack.c.b16 %v74, %v73
  %v85 = vpack.c.b16 %v76, %v75
  %v86 = vpack.c.b16 %v78, %v77
  %v96 = vunpack.c.l.b16 %v31
  %v97 = vunpack.c.l.b16 %v32
  %v98 = vunpack.c.l.b16 %v33
  %v99 = vunpack.c.l.b16 %v34
  %v100 = vunpack.c.l.b16 %v35
  %v101 = vunpack.c.l.b16 %v36
  %v102 = vunpack.c.l.b16 %v37
  %v103 = vunpack.c.l.b16 %v38
  %v104 = vunpack.c.l.b16 %v39
  %v105 = vpack.c.b16 %v97, %v96
  %v106 = vpack.c.b16 %v99, %v98
  %v107 = vpack.c.b16 %v101, %v100
  %v108 = vpack.c.b16 %v103, %v102
  %v109 = vpack.c.b16 %v104, %v104
  %vm114 = vcmask 588800
  %v116 = vsel %vm114, %v79, 0
  %v119 = vsel %vm114, %v80, 0
  %v122 = vsel %vm114, %v81, 0
  %v125 = vsel %vm114, %v82, 0
  %v128 = vsel %vm114, %v83, 0
  %v131 = vsel %vm114, %v84, 0
  %v134 = vsel %vm114, %v85, 0
  %v137 = vsel %vm114, %v86, 0
  %vm139 = vcmask 1043456
  %v141 = vsel %vm139, %v109, 0
  %143 = vmatprep.subr.bf16.mxu0 0
  %144 = vmatpush1.bf16.msra.mxu0 %v105
  %145 = vmatprep.subr.bf16.mxu0 0
  %146 = vmatpush1.bf16.msra.mxu0 %v106
  %147 = vmatprep.subr.bf16.mxu0 0
  %148 = vmatpush1.bf16.msra.mxu0 %v107
  %149 = vmatprep.subr.bf16.mxu0 0
  %150 = vmatpush1.bf16.msra.mxu0 %v108
  %151 = vmatprep.subr.bf16.mxu0 0
  %152 = vmatpush1.bf16.msra.mxu0 %v141
  %153 = vmatprep.subr.bf16.mxu0 0
  %154 = vmatpush1.bf16.msra.mxu0 0
  %155 = vmatprep.subr.bf16.mxu0 0
  %156 = vmatpush1.bf16.msra.mxu0 0
  %157 = vmatprep.subr.bf16.mxu0 0
  %158 = vmatpush1.bf16.msra.mxu0 0
  %159 = vmatprep.subr.bf16.mxu0 0
  %160 = vmatpush1.bf16.msra.mxu0 0
  %161 = vmatprep.subr.bf16.mxu0 0
  %162 = vmatpush1.bf16.msra.mxu0 0
  %163 = vmatprep.subr.bf16.mxu0 0
  %164 = vmatpush1.bf16.msra.mxu0 0
  %165 = vmatprep.subr.bf16.mxu0 0
  %166 = vmatpush1.bf16.msra.mxu0 0
  %167 = vmatprep.subr.bf16.mxu0 0
  %168 = vmatpush1.bf16.msra.mxu0 0
  %169 = vmatprep.subr.bf16.mxu0 0
  %170 = vmatpush1.bf16.msra.mxu0 0
  %171 = vmatprep.subr.bf16.mxu0 0
  %172 = vmatpush1.bf16.msra.mxu0 0
  %173 = vmatprep.subr.bf16.mxu0 0
  %174 = vmatpush1.bf16.msra.mxu0 0
  %175 = vmatprep.mubr.bf16.mxu0 0
  %176 = vmatmul.mubr.bf16.gmra.mrb[0].mxu0 %v116
  %v177 = vpop.f32.mrb[0].mxu0
  %v178 = vadd.f32 %v45, %v177
  %v179 = vpop.f32.mrb[0].mxu0
  %v180 = vpop.f32.mrb[0].mxu0
  %v181 = vadd.f32 %v45, %v180
  %v182 = vpop.f32.mrb[0].mxu0
  %183 = vmatprep.mubr.bf16.mxu0 0
  %184 = vmatmul.mubr.bf16.gmra.mrb[0].mxu0 %v119
  %v185 = vpop.f32.mrb[0].mxu0
  %v186 = vadd.f32 %v45, %v185
  %v187 = vpop.f32.mrb[0].mxu0
  %v188 = vpop.f32.mrb[0].mxu0
  %v189 = vadd.f32 %v45, %v188
  %v190 = vpop.f32.mrb[0].mxu0
  %191 = vmatprep.mubr.bf16.mxu0 0
  %192 = vmatmul.mubr.bf16.gmra.mrb[0].mxu0 %v122
  %v193 = vpop.f32.mrb[0].mxu0
  %v194 = vadd.f32 %v45, %v193
  %v195 = vpop.f32.mrb[0].mxu0
  %v196 = vpop.f32.mrb[0].mxu0
  %v197 = vadd.f32 %v45, %v196
  %v198 = vpop.f32.mrb[0].mxu0
  %199 = vmatprep.mubr.bf16.mxu0 0
  %200 = vmatmul.mubr.bf16.gmra.mrb[0].mxu0 %v125
  %v201 = vpop.f32.mrb[0].mxu0
  %v202 = vadd.f32 %v45, %v201
  %v203 = vpop.f32.mrb[0].mxu0
  %v204 = vpop.f32.mrb[0].mxu0
  %v205 = vadd.f32 %v45, %v204
  %v206 = vpop.f32.mrb[0].mxu0
  %207 = vmatprep.mubr.bf16.mxu0 0
  %208 = vmatmul.mubr.bf16.gmra.mrb[0].mxu0 %v128
  %v209 = vpop.f32.mrb[0].mxu0
  %v210 = vadd.f32 %v45, %v209
  %v211 = vpop.f32.mrb[0].mxu0
  %v212 = vpop.f32.mrb[0].mxu0
  %v213 = vadd.f32 %v45, %v212
  %v214 = vpop.f32.mrb[0].mxu0
  %215 = vmatprep.mubr.bf16.mxu0 0
  %216 = vmatmul.mubr.bf16.gmra.mrb[0].mxu0 %v131
  %v217 = vpop.f32.mrb[0].mxu0
  %v218 = vadd.f32 %v45, %v217
  %v219 = vpop.f32.mrb[0].mxu0
  %v220 = vpop.f32.mrb[0].mxu0
  %v221 = vadd.f32 %v45, %v220
  %v222 = vpop.f32.mrb[0].mxu0
  %223 = vmatprep.mubr.bf16.mxu0 0
  %224 = vmatmul.mubr.bf16.gmra.mrb[0].mxu0 %v134
  %v225 = vpop.f32.mrb[0].mxu0
  %v226 = vadd.f32 %v45, %v225
  %v227 = vpop.f32.mrb[0].mxu0
  %v228 = vpop.f32.mrb[0].mxu0
  %v229 = vadd.f32 %v45, %v228
  %v230 = vpop.f32.mrb[0].mxu0
  %231 = vmatprep.mubr.bf16.mxu0 0
  %232 = vmatmul.mubr.bf16.gmra.mrb[0].mxu0 %v137
  %v233 = vpop.f32.mrb[0].mxu0
  %v234 = vadd.f32 %v45, %v233
  %v235 = vpop.f32.mrb[0].mxu0
  %v236 = vpop.f32.mrb[0].mxu0
  %v237 = vadd.f32 %v45, %v236
  %v238 = vpop.f32.mrb[0].mxu0
  %239 = vdwg.mxu0
  %v240 = vmax.f32 %v178, 0.0
  %v241 = vmax.f32 %v181, 0.0
  %v242 = vmax.f32 %v186, 0.0
  %v243 = vmax.f32 %v189, 0.0
  %v244 = vmax.f32 %v194, 0.0
  %v245 = vmax.f32 %v197, 0.0
  %v246 = vmax.f32 %v202, 0.0
  %v247 = vmax.f32 %v205, 0.0
  %v248 = vmax.f32 %v210, 0.0
  %v249 = vmax.f32 %v213, 0.0
  %v250 = vmax.f32 %v218, 0.0
  %v251 = vmax.f32 %v221, 0.0
  %v252 = vmax.f32 %v226, 0.0
  %v253 = vmax.f32 %v229, 0.0
  %v254 = vmax.f32 %v234, 0.0
  %v255 = vmax.f32 %v237, 0.0
  %256 = vst [vmem:[%s3] sm:$0xff] %v240
  %257 = vst [vmem:[%s3 + $0x8] sm:$0xff] %v241
  %258 = vst [vmem:[%s3 + $0x10] sm:$0xff] %v242
  %259 = vst [vmem:[%s3 + $0x18] sm:$0xff] %v243
  %260 = vst [vmem:[%s3 + $0x20] sm:$0xff] %v244
  %261 = vst [vmem:[%s3 + $0x28] sm:$0xff] %v245
  %262 = vst [vmem:[%s3 + $0x30] sm:$0xff] %v246
  %263 = vst [vmem:[%s3 + $0x38] sm:$0xff] %v247
  %264 = vst [vmem:[%s3 + $0x40] sm:$0xff] %v248
  %265 = vst [vmem:[%s3 + $0x48] sm:$0xff] %v249
  %266 = vst [vmem:[%s3 + $0x50] sm:$0xff] %v250
  %267 = vst [vmem:[%s3 + $0x58] sm:$0xff] %v251
  %268 = vst [vmem:[%s3 + $0x60] sm:$0xff] %v252
  %269 = vst [vmem:[%s3 + $0x68] sm:$0xff] %v253
  %270 = vst [vmem:[%s3 + $0x70] sm:$0xff] %v254
  %271 = vst [vmem:[%s3 + $0x78] sm:$0xff] %v255
  // Predicated region
  $region14: #{_lambda_.3} parent=0 // pred_check
    _
  $region15: #{_lambda_.3} parent=0 // pred_check_branch
    %273 = sbr.rel (0) target = $region17
  $region16: #{_lambda_.3} parent=0 // pred_region
    _
  $region17: #{_lambda_.3} parent=0 // pred_fallthru
    _
  // Predicated region
  $region18: #{_lambda_.3} parent=0 // pred_check
    _
  $region19: #{_lambda_.3} parent=0 // pred_check_branch
    %275 = sbr.rel (0) target = $region21
  $region20: #{_lambda_.3} parent=0 // pred_region
    _
  $region21: #{_lambda_.3} parent=0 // pred_fallthru
    _

</llo_original>
